<compile_context>
chip_gen: v5e
topology: v5e:2x2
jax: 0.10.0
libtpu: 0.0.40
codegen_flags: <defaults>
</compile_context>

<pallas_src>
import jax
import jax.numpy as jnp
from jax.experimental import pallas as pl
from jax.experimental.pallas import tpu as pltpu

_CHUNK = 512  # lanes per inner-loop chunk (multiple of 128)


def _make_kernel(din, chunk, n_chunks):
    """Build the kernel for a fixed (din, chunk, n_chunks) configuration."""

    def kernel(yT_ref, w1_ref, b1_ref, w2_ref, b2_ref, oT_ref):
        # yT_ref: (din, bm)   w1_ref: (dh, din)   b1_ref: (dh, 1)
        # w2_ref: (dout, dh)  b2_ref: (dout, 1)   oT_ref: (dout, bm)
        # Hoist the (tiny) weight/bias loads out of the chunk loop.
        w1_cols = [w1_ref[:, d:d + 1] for d in range(din)]   # each (dh, 1)
        b1 = b1_ref[...]                                      # (dh, 1)
        w2 = w2_ref[...]                                      # (dout, dh)
        b2 = b2_ref[...]                                      # (dout, 1)

        def compute(start):
            # ---- layer 1 on the VPU: K=2 contraction as lane-dense FMAs ----
            h = b1                                            # (dh, 1)
            for d in range(din):
                y_row = yT_ref[d:d + 1, pl.ds(start, chunk)]  # (1, chunk)
                h = h + w1_cols[d] * y_row                    # -> (dh, chunk)
            h = jnp.maximum(h, 0.0)
            # ---- layer 2 on the MXU: (dout, dh) @ (dh, chunk) ----
            out = jnp.dot(w2, h, preferred_element_type=jnp.float32) + b2
            oT_ref[:, pl.ds(start, chunk)] = out.astype(oT_ref.dtype)

        if n_chunks == 1:
            compute(0)
        else:
            # Un-unrolled loop bounds the live (dh, chunk) intermediate to
            # ~28 vregs regardless of how big the batch tile is.
            def body(c, carry):
                compute(pl.multiple_of(c * chunk, chunk))
                return carry

            jax.lax.fori_loop(0, n_chunks, body, 0)

    return kernel


def _choose_bm(N, bm_hint):
    """Pick the batch tile (lane) width.

    Small N: a single tile just wide enough (multiple of 128).
    Large N: big tiles (multiple of _CHUNK) to amortize the ~0.35 us per-step
    overhead, but always >= 2 grid steps so a v7x megacore can shard the
    "parallel" grid axis across both TensorCores.
    """
    if N <= _CHUNK:
        return max(128, pl.cdiv(N, 128) * 128)
    bm = max(_CHUNK, (bm_hint // _CHUNK) * _CHUNK)
    tiles = pl.cdiv(N, _CHUNK)                      # N measured in 512-lane units
    if tiles * _CHUNK <= bm:
        # One tile would cover the whole batch -> split into (at least) two.
        bm = pl.cdiv(tiles, 2) * _CHUNK
    return bm


def ode_mlp_T(yT, w1, b1, w2, b2, *, bm=4096):
    """Forward of ODEnnR.net in batch-on-lanes layout.

    yT : (din, N) float32   -- keep the ODE state in this layout across solver
                               steps; no per-call transpose/pad is done here.
    w1 : (dh, din), b1: (dh,)     (PyTorch nn.Linear orientation)
    w2 : (dout, dh), b2: (dout,)
    Returns (dout, N) float32.
    """
    din, N = yT.shape
    dh = w1.shape[0]
    dout = w2.shape[0]

    bm = _choose_bm(N, bm)
    chunk = min(_CHUNK, bm)          # bm is always a multiple of chunk
    n_chunks = bm // chunk
    grid = (pl.cdiv(N, bm),)

    b1c = b1.reshape(dh, 1)          # column vectors -> bias broadcasts over lanes
    b2c = b2.reshape(dout, 1)

    # Physical HBM traffic: the (din,N)/(dout,N) f32 slabs are padded to 8
    # sublanes per tile, so they move 8 rows' worth of bytes each way.
    n_lanes = pl.cdiv(N, 128) * 128
    cost = pl.CostEstimate(
        flops=2 * N * (din * dh + dh * dout),
        transcendentals=0,
        bytes_accessed=4 * (2 * 8 * n_lanes + din * dh + dh * dout + dh + dout),
    )

    return pl.pallas_call(
        _make_kernel(din, chunk, n_chunks),
        out_shape=jax.ShapeDtypeStruct((dout, N), jnp.float32),
        grid=grid,
        in_specs=[
            pl.BlockSpec((din, bm), lambda i: (0, i)),   # y tile (batch on lanes)
            pl.BlockSpec((dh, din), lambda i: (0, 0)),   # W1 (full, resident)
            pl.BlockSpec((dh, 1), lambda i: (0, 0)),     # b1
            pl.BlockSpec((dout, dh), lambda i: (0, 0)),  # W2 (full, resident)
            pl.BlockSpec((dout, 1), lambda i: (0, 0)),   # b2
        ],
        out_specs=pl.BlockSpec((dout, bm), lambda i: (0, i)),
        compiler_params=pltpu.CompilerParams(
            dimension_semantics=("parallel",)),
        cost_estimate=cost,
    )(yT, w1, b1c, w2, b2c)


def ode_mlp(y, w1, b1, w2, b2, *, bm=4096):
    """Convenience entry for (N, din) inputs (transposes once at the boundary).

    For repeated calls inside an ODE time loop, keep the state in (din, N)
    layout and call ode_mlp_T directly to avoid per-step transpose round trips.
    The forward ignores t (kept out of the signature; API parity only).
    """
    return ode_mlp_T(y.T, w1, b1, w2, b2, bm=bm).T


def init_params(key):
    """Deterministic init matching the PyTorch __init__:
    weights ~ Normal(0, 0.1), biases = 0.  PyTorch (out, in) orientation."""
    k1, k2 = jax.random.split(key)
    w1 = 0.1 * jax.random.normal(k1, (50, 2), dtype=jnp.float32)
    b1 = jnp.zeros((50,), dtype=jnp.float32)
    w2 = 0.1 * jax.random.normal(k2, (2, 50), dtype=jnp.float32)
    b2 = jnp.zeros((2,), dtype=jnp.float32)
    return w1, b1, w2, b2


def _reference(y, w1, b1, w2, b2):
    # Plain-JAX reference with nn.Linear semantics: y @ W.T + b
    return jnp.maximum(y @ w1.T + b1, 0.0) @ w2.T + b2


if __name__ == "__main__":
    key = jax.random.PRNGKey(0)
    kp, ky1, ky2, ky3 = jax.random.split(key, 4)

    w1, b1, w2, b2 = init_params(kp)
    t = jnp.float32(0.0)  # forward ignores t, kept for API parity

    # Case 1: small batch (single grid step, single ragged block 8 -> 128 lanes).
    y_small = jax.random.normal(ky1, (8, 2), dtype=jnp.float32)
    out_small = jax.block_until_ready(ode_mlp(y_small, w1, b1, w2, b2))
    assert out_small.shape == (8, 2)
    assert jnp.allclose(out_small, _reference(y_small, w1, b1, w2, b2),
                        atol=1e-5, rtol=1e-5)

    # Case 2: solver-native transposed layout, no wrapper transpose/pad.
    #         N=2048 -> bm=1024 (two parallel grid steps, two chunks each).
    yT = jax.random.normal(ky2, (2, 2048), dtype=jnp.float32)
    outT = jax.block_until_ready(ode_mlp_T(yT, w1, b1, w2, b2))
    assert outT.shape == (2, 2048)
    assert jnp.allclose(outT.T, _reference(yT.T, w1, b1, w2, b2),
                        atol=1e-5, rtol=1e-5)

    # Case 3: awkward batch size with a ragged last block (N=1000, bm=512).
    y_tail = jax.random.normal(ky3, (1000, 2), dtype=jnp.float32)
    out_tail = jax.block_until_ready(ode_mlp(y_tail, w1, b1, w2, b2))
    assert out_tail.shape == (1000, 2)
    assert jnp.allclose(out_tail, _reference(y_tail, w1, b1, w2, b2),
                        atol=1e-5, rtol=1e-5)

    print("KERNEL_OK")
</pallas_src>

<mosaic_0001>
module attributes {stable_mosaic.version = 11 : i64} {
  func.func @kernel(%arg0: i32, %arg1: memref<2x128xf32, #tpu.memory_space<vmem>>, %arg2: memref<50x2xf32, #tpu.memory_space<vmem>>, %arg3: memref<50x1xf32, #tpu.memory_space<vmem>>, %arg4: memref<2x50xf32, #tpu.memory_space<vmem>>, %arg5: memref<2x1xf32, #tpu.memory_space<vmem>>, %arg6: memref<2x128xf32, #tpu.memory_space<vmem>>) attributes {dimension_semantics = [#tpu.dimension_semantics<parallel>], iteration_bounds = array<i64: 1>, scalar_prefetch = 0 : i64, scratch_operands = 0 : i64, tpu.core_type = #tpu.core_type<tc>, window_params = [{transform_indices = @transform_0, window_bounds = array<i64: 2, 128>}, {pipeline_mode = #tpu.pipeline_mode<synchronous>, transform_indices = @transform_1, window_bounds = array<i64: 50, 2>}, {pipeline_mode = #tpu.pipeline_mode<synchronous>, transform_indices = @transform_2, window_bounds = array<i64: 50, 1>}, {pipeline_mode = #tpu.pipeline_mode<synchronous>, transform_indices = @transform_3, window_bounds = array<i64: 2, 50>}, {pipeline_mode = #tpu.pipeline_mode<synchronous>, transform_indices = @transform_4, window_bounds = array<i64: 2, 1>}, {transform_indices = @transform_5, window_bounds = array<i64: 2, 128>}]} {
    %c0 = arith.constant 0 : index
    %c0_0 = arith.constant 0 : index
    %0 = vector.load %arg2[%c0, %c0_0] : memref<50x2xf32, #tpu.memory_space<vmem>>, vector<50x1xf32>
    %c0_1 = arith.constant 0 : index
    %c1 = arith.constant 1 : index
    %1 = vector.load %arg2[%c0_1, %c1] : memref<50x2xf32, #tpu.memory_space<vmem>>, vector<50x1xf32>
    %c0_2 = arith.constant 0 : index
    %c0_3 = arith.constant 0 : index
    %2 = vector.load %arg3[%c0_2, %c0_3] : memref<50x1xf32, #tpu.memory_space<vmem>>, vector<50x1xf32>
    %c0_4 = arith.constant 0 : index
    %c0_5 = arith.constant 0 : index
    %3 = vector.load %arg4[%c0_4, %c0_5] : memref<2x50xf32, #tpu.memory_space<vmem>>, vector<2x50xf32>
    %c0_6 = arith.constant 0 : index
    %c0_7 = arith.constant 0 : index
    %4 = vector.load %arg5[%c0_6, %c0_7] : memref<2x1xf32, #tpu.memory_space<vmem>>, vector<2x1xf32>
    %c0_8 = arith.constant 0 : index
    %c0_9 = arith.constant 0 : index
    %5 = vector.load %arg1[%c0_8, %c0_9] : memref<2x128xf32, #tpu.memory_space<vmem>>, vector<1x128xf32>
    %6 = vector.broadcast %0 : vector<50x1xf32> to vector<50x128xf32>
    %7 = vector.broadcast %5 : vector<1x128xf32> to vector<50x128xf32>
    %8 = arith.mulf %6, %7 : vector<50x128xf32>
    %9 = vector.broadcast %2 : vector<50x1xf32> to vector<50x128xf32>
    %10 = arith.addf %9, %8 : vector<50x128xf32>
    %c1_10 = arith.constant 1 : index
    %c0_11 = arith.constant 0 : index
    %11 = vector.load %arg1[%c1_10, %c0_11] : memref<2x128xf32, #tpu.memory_space<vmem>>, vector<1x128xf32>
    %12 = vector.broadcast %1 : vector<50x1xf32> to vector<50x128xf32>
    %13 = vector.broadcast %11 : vector<1x128xf32> to vector<50x128xf32>
    %14 = arith.mulf %12, %13 : vector<50x128xf32>
    %15 = arith.addf %10, %14 : vector<50x128xf32>
    %cst = arith.constant 0.000000e+00 : f32
    %16 = vector.broadcast %cst : f32 to vector<50x128xf32>
    %17 = arith.maximumf %15, %16 : vector<50x128xf32>
    %cst_12 = arith.constant dense<0.000000e+00> : vector<2x128xf32>
    %18 = tpu.matmul %3, %17, %cst_12 {dimension_numbers = #tpu.dot_dimension_numbers<[1], [0], [0], [1], [0, 0, 1, 1], [], []>} : vector<2x50xf32>, vector<50x128xf32>, vector<2x128xf32> -> vector<2x128xf32>
    %19 = vector.broadcast %4 : vector<2x1xf32> to vector<2x128xf32>
    %20 = arith.addf %18, %19 : vector<2x128xf32>
    %c0_13 = arith.constant 0 : index
    %c0_14 = arith.constant 0 : index
    %21 = vector.load %arg6[%c0_13, %c0_14] : memref<2x128xf32, #tpu.memory_space<vmem>>, vector<2x128xf32>
    tpu.vector_store %arg6[%c0_13, %c0_14], %20 {strides = array<i32>} : memref<2x128xf32, #tpu.memory_space<vmem>>, vector<2x128xf32>,
    return
  }
  func.func @transform_0(%arg0: i32) -> (i32, i32) {
    %c0_i32 = arith.constant 0 : i32
    %c0_i32_0 = arith.constant 0 : i32
    return %c0_i32, %arg0 : i32, i32
  }
  func.func @transform_1(%arg0: i32) -> (i32, i32) {
    %c0_i32 = arith.constant 0 : i32
    %c0_i32_0 = arith.constant 0 : i32
    %c0_i32_1 = arith.constant 0 : i32
    return %c0_i32, %c0_i32_0 : i32, i32
  }
  func.func @transform_2(%arg0: i32) -> (i32, i32) {
    %c0_i32 = arith.constant 0 : i32
    %c0_i32_0 = arith.constant 0 : i32
    %c0_i32_1 = arith.constant 0 : i32
    return %c0_i32, %c0_i32_0 : i32, i32
  }
  func.func @transform_3(%arg0: i32) -> (i32, i32) {
    %c0_i32 = arith.constant 0 : i32
    %c0_i32_0 = arith.constant 0 : i32
    %c0_i32_1 = arith.constant 0 : i32
    return %c0_i32, %c0_i32_0 : i32, i32
  }
  func.func @transform_4(%arg0: i32) -> (i32, i32) {
    %c0_i32 = arith.constant 0 : i32
    %c0_i32_0 = arith.constant 0 : i32
    %c0_i32_1 = arith.constant 0 : i32
    return %c0_i32, %c0_i32_0 : i32, i32
  }
  func.func @transform_5(%arg0: i32) -> (i32, i32) {
    %c0_i32 = arith.constant 0 : i32
    %c0_i32_0 = arith.constant 0 : i32
    return %c0_i32, %arg0 : i32, i32
  }
}

</mosaic_0001>

<llo_original>
// kernel: tpu_custom_call.1
$region0: #{tpu_custom_call.1}
  #allocation0 [shape = 'u32[]', space=smem, size = 0x4, offset = 0x4, fixed_abs, tag = 'smem constant byte address 0x4 - core index']
  #allocation1 [shape = 'u32[72,128]{1,0:T(1,128)}', space=vmem, size = 0x9000, scoped, tag = 'internal scratch']
  %s0 = inlined_call_operand.vmem [shape: f32[2,8], index: 0, kind: input, shape index: {}]
  %s1 = inlined_call_operand.vmem [shape: f32[50,2], index: 1, kind: input, shape index: {}]
  %s2 = inlined_call_operand.vmem [shape: f32[50,1], index: 2, kind: input, shape index: {}]
  %s3 = inlined_call_operand.vmem [shape: f32[2,50], index: 3, kind: input, shape index: {}]
  %s4 = inlined_call_operand.vmem [shape: f32[2,1], index: 4, kind: input, shape index: {}]
  %s5 = inlined_call_operand.hbm [shape: f32[2,8], index: 5, kind: output, shape index: {}]
  %s6 = sld [smem:[#allocation0]]
  $region30: #{tpu_custom_call.1} parent=0
    _
  %s8 = ssub.s32 1, %s6
  %s9 = scalar_select 0, %s8, %s6
  $region1: #{tpu_custom_call.1} parent=0
    #allocation2 [shape = 'u8[1024]{0}', space=vmem, size = 0x400, scoped, tag = 'output window, operand 0, single buffered']
    #allocation3 [shape = 's32[1]{0}', space=sflag, size = 0x4, scoped, tag = 'scoped memory for tpu_custom_call.1']
    %10 = vsyncpa [#allocation3], 0
    // Predicated region
    $region2: #{tpu_custom_call.1} parent=1 // pred_check
      _
    $region3: #{tpu_custom_call.1} parent=1 // pred_check_branch
      %12 = sbr.rel (0) target = $region5
    $region4: #{tpu_custom_call.1} parent=1 // pred_region
      _
    $region5: #{tpu_custom_call.1} parent=1 // pred_fallthru
      _
    // Predicated region
    $region6: #{tpu_custom_call.1} parent=1 // pred_check
      _
    $region7: #{tpu_custom_call.1} parent=1 // pred_check_branch
      %14 = sbr.rel (0) target = $region9
    $region8: #{tpu_custom_call.1} parent=1 // pred_region
      _
    $region9: #{tpu_custom_call.1} parent=1 // pred_fallthru
      _
    // Predicated region
    $region10: #{tpu_custom_call.1} parent=1 // pred_check
      _
    $region11: #{tpu_custom_call.1} parent=1 // pred_check_branch
      %16 = sbr.rel (0) target = $region13
    $region12: #{tpu_custom_call.1} parent=1 // pred_region
      _
    $region13: #{tpu_custom_call.1} parent=1 // pred_fallthru
      _
    // Predicated region
    $region14: #{tpu_custom_call.1} parent=1 // pred_check
      _
    $region15: #{tpu_custom_call.1} parent=1 // pred_check_branch
      %18 = sbr.rel (0) target = $region17
    $region16: #{tpu_custom_call.1} parent=1 // pred_region
      _
    $region17: #{tpu_custom_call.1} parent=1 // pred_fallthru
      _
    // Predicated region
    $region18: #{tpu_custom_call.1} parent=1 // pred_check
      _
    $region19: #{tpu_custom_call.1} parent=1 // pred_check_branch
      %20 = sbr.rel (0) target = $region21
    $region20: #{tpu_custom_call.1} parent=1 // pred_region
      _
    $region21: #{tpu_custom_call.1} parent=1 // pred_fallthru
      _
    %v21 = vld [vmem:[%s1] sm:$0xff]
    %v22 = vld [vmem:[%s1 + $0x8] sm:$0xff]
    %v23 = vld [vmem:[%s1 + $0x10] sm:$0xff]
    %v24 = vld [vmem:[%s1 + $0x18] sm:$0xff]
    %v25 = vld [vmem:[%s1 + $0x20] sm:$0xff]
    %v26 = vld [vmem:[%s1 + $0x28] sm:$0xff]
    %v27 = vld [vmem:[%s1 + $0x30] sm:$0x3]
    %v28 = vld [vmem:[%s2] sm:$0xff]
    %v29 = vld [vmem:[%s2 + $0x8] sm:$0xff]
    %v30 = vld [vmem:[%s2 + $0x10] sm:$0xff]
    %v31 = vld [vmem:[%s2 + $0x18] sm:$0xff]
    %v32 = vld [vmem:[%s2 + $0x20] sm:$0xff]
    %v33 = vld [vmem:[%s2 + $0x28] sm:$0xff]
    %v34 = vld [vmem:[%s2 + $0x30] sm:$0x3]
    %v35 = vld [vmem:[%s3] sm:$0x3]
    %v36 = vld [vmem:[%s4] sm:$0x3]
    %v37 = vld [vmem:[%s0] sm:$0x1]
    %39 = vset.pattern.permute.xlu0 0
    %40 = vperm.xlu0 %39, %v21
    %v41 = vpop.permute.xlu0 %40
    %44 = vset.pattern.permute.xlu0 0
    %45 = vperm.xlu0 %44, %v22
    %v46 = vpop.permute.xlu0 %45
    %49 = vset.pattern.permute.xlu0 0
    %50 = vperm.xlu0 %49, %v23
    %v51 = vpop.permute.xlu0 %50
    %54 = vset.pattern.permute.xlu0 0
    %55 = vperm.xlu0 %54, %v24
    %v56 = vpop.permute.xlu0 %55
    %59 = vset.pattern.permute.xlu0 0
    %60 = vperm.xlu0 %59, %v25
    %v61 = vpop.permute.xlu0 %60
    %64 = vset.pattern.permute.xlu0 0
    %65 = vperm.xlu0 %64, %v26
    %v66 = vpop.permute.xlu0 %65
    %69 = vset.pattern.permute.xlu0 0
    %70 = vperm.xlu0 %69, %v27
    %v71 = vpop.permute.xlu0 %70
    %v73 = vperm.slane %v37, 0
    %v74 = vmul.f32 %v41, %v73
    %v75 = vmul.f32 %v46, %v73
    %v76 = vmul.f32 %v51, %v73
    %v77 = vmul.f32 %v56, %v73
    %v78 = vmul.f32 %v61, %v73
    %v79 = vmul.f32 %v66, %v73
    %v80 = vmul.f32 %v71, %v73
    %82 = vset.pattern.permute.xlu0 0
    %83 = vperm.xlu0 %82, %v28
    %v84 = vpop.permute.xlu0 %83
    %87 = vset.pattern.permute.xlu0 0
    %88 = vperm.xlu0 %87, %v29
    %v89 = vpop.permute.xlu0 %88
    %92 = vset.pattern.permute.xlu0 0
    %93 = vperm.xlu0 %92, %v30
    %v94 = vpop.permute.xlu0 %93
    %97 = vset.pattern.permute.xlu0 0
    %98 = vperm.xlu0 %97, %v31
    %v99 = vpop.permute.xlu0 %98
    %102 = vset.pattern.permute.xlu0 0
    %103 = vperm.xlu0 %102, %v32
    %v104 = vpop.permute.xlu0 %103
    %107 = vset.pattern.permute.xlu0 0
    %108 = vperm.xlu0 %107, %v33
    %v109 = vpop.permute.xlu0 %108
    %112 = vset.pattern.permute.xlu0 0
    %113 = vperm.xlu0 %112, %v34
    %v114 = vpop.permute.xlu0 %113
    %v116 = vadd.f32 %v84, %v74
    %v117 = vadd.f32 %v89, %v75
    %v118 = vadd.f32 %v94, %v76
    %v119 = vadd.f32 %v99, %v77
    %v120 = vadd.f32 %v104, %v78
    %v121 = vadd.f32 %v109, %v79
    %v122 = vadd.f32 %v114, %v80
    %v123 = vld [vmem:[%s0 + $0x1] sm:$0x1]
    %124 = vset.pattern.permute.xlu0 1
    %125 = vperm.xlu0 %124, %v21
    %v126 = vpop.permute.xlu0 %125
    %128 = vset.pattern.permute.xlu0 1
    %129 = vperm.xlu0 %128, %v22
    %v130 = vpop.permute.xlu0 %129
    %132 = vset.pattern.permute.xlu0 1
    %133 = vperm.xlu0 %132, %v23
    %v134 = vpop.permute.xlu0 %133
    %136 = vset.pattern.permute.xlu0 1
    %137 = vperm.xlu0 %136, %v24
    %v138 = vpop.permute.xlu0 %137
    %140 = vset.pattern.permute.xlu0 1
    %141 = vperm.xlu0 %140, %v25
    %v142 = vpop.permute.xlu0 %141
    %144 = vset.pattern.permute.xlu0 1
    %145 = vperm.xlu0 %144, %v26
    %v146 = vpop.permute.xlu0 %145
    %148 = vset.pattern.permute.xlu0 1
    %149 = vperm.xlu0 %148, %v27
    %v150 = vpop.permute.xlu0 %149
    %v152 = vperm.slane %v123, 0
    %v153 = vmul.f32 %v126, %v152
    %v154 = vmul.f32 %v130, %v152
    %v155 = vmul.f32 %v134, %v152
    %v156 = vmul.f32 %v138, %v152
    %v157 = vmul.f32 %v142, %v152
    %v158 = vmul.f32 %v146, %v152
    %v159 = vmul.f32 %v150, %v152
    %v160 = vadd.f32 %v116, %v153
    %v161 = vadd.f32 %v117, %v154
    %v162 = vadd.f32 %v118, %v155
    %v163 = vadd.f32 %v119, %v156
    %v164 = vadd.f32 %v120, %v157
    %v165 = vadd.f32 %v121, %v158
    %v166 = vadd.f32 %v122, %v159
    %v167 = vmax.f32 %v160, 0.0
    %v168 = vmax.f32 %v161, 0.0
    %v169 = vmax.f32 %v162, 0.0
    %v170 = vmax.f32 %v163, 0.0
    %v171 = vmax.f32 %v164, 0.0
    %v172 = vmax.f32 %v165, 0.0
    %v173 = vmax.f32 %v166, 0.0
    %175 = vset.pattern.permute.xlu0 0
    %176 = vperm.xlu0 %175, %v36
    %v177 = vpop.permute.xlu0 %176
    %vm179 = vcmask 408576
    %v181 = vsel %vm179, %v35, 0
    %vm183 = vcmask 1041408
    %v185 = vsel %vm183, %v173, 0
    %187 = vmatpush.msra.mxu0 0.0
    %188 = vmatpush.msra.mxu0 0.0
    %189 = vmatpush.msra.mxu0 0.0
    %190 = vmatpush.msra.mxu0 0.0
    %191 = vmatpush.msra.mxu0 0.0
    %192 = vmatpush.msra.mxu0 0.0
    %193 = vmatpush.msra.mxu0 0.0
    %194 = vmatpush.msra.mxu0 0.0
    %195 = vmatpush.msra.mxu0 0.0
    %196 = vmatpush.msra.mxu0 %v185
    %197 = vmatpush.msra.mxu0 %v172
    %198 = vmatpush.msra.mxu0 %v171
    %199 = vmatpush.msra.mxu0 %v170
    %200 = vmatpush.msra.mxu0 %v169
    %201 = vmatpush.msra.mxu0 %v168
    %202 = vmatpush.msra.mxu0 %v167
    %203 = vmatmul.f32.gmra.mxu0 %v181
    %v204 = vpop.f32.mrf.mxu0
    %v205 = vadd.f32 %v177, %v204
    %206 = vdwg.mxu0
    %207 = vst [vmem:[#allocation2] sm:$0x3] %v205
    // Predicated region
    $region22: #{tpu_custom_call.1} parent=1 // pred_check
      _
    $region23: #{tpu_custom_call.1} parent=1 // pred_check_branch
      %209 = sbr.rel (0) target = $region25
    $region24: #{tpu_custom_call.1} parent=1 // pred_region
      %211 = vsyncadd [#allocation3], 0
      %s213 = sshll.u32 [#allocation2], 4
      %s214 = int_to_ptr.vmem [resolvable:$true] %s213
      %s215 = sshll.u32 %s5, 4
      %s216 = int_to_ptr.hbm [resolvable:$true] %s215
      %218 = dma.vmem_to_hbm [thread:$0]  %s214, 32, %s216, [#allocation3]
    $region25: #{tpu_custom_call.1} parent=1 // pred_fallthru
      _
    // Predicated region
    $region26: #{tpu_custom_call.1} parent=1 // pred_check
      _
    $region27: #{tpu_custom_call.1} parent=1 // pred_check_branch
      %220 = sbr.rel (0) target = $region29
    $region28: #{tpu_custom_call.1} parent=1 // pred_region
      %222 = dma.done [#allocation3], 32
    $region29: #{tpu_custom_call.1} parent=1 // pred_fallthru
      _
    %223 = vsyncpa [#allocation3], 1

</llo_original>
